<compile_context>
chip_gen: v7x
topology: tpu7x:2x2x1
jax: 0.10.0
libtpu: 0.0.40
codegen_flags: <defaults>
</compile_context>

<pallas_src>
import numpy as np
import jax
import jax.numpy as jnp
from jax.experimental import pallas as pl
from jax.experimental.pallas import tpu as pltpu


def _ema_matrix(T, alpha):
    """Fused EMA matrix so that ma = M @ x along time (float64 build -> f32).

    Entries are in [0, 1]; terms below f32 denormal range flush to zero on TPU
    but their contribution is negligible, so results match the f64 reference.
    """
    t_idx = np.arange(T, dtype=np.float64)
    diff = t_idx[:, None] - t_idx[None, :]                  # t - s
    M = alpha * np.power(1.0 - alpha, np.maximum(diff, 0.0))
    M[:, 0] = np.power(1.0 - alpha, t_idx)                  # s == 0 has no alpha
    M = np.tril(M)
    return M.astype(np.float32)


# ---------------------------------------------------------------- kernels ---

def _ema_kernel(m_ref, x_ref, ma_ref):
    # (T, T) @ (T, n_blk) on the MXU, written straight into the output ref.
    ma_ref[...] = jnp.dot(m_ref[...], x_ref[...],
                          preferred_element_type=jnp.float32)


def _decomp_kernel(m_ref, x_ref, res_ref, ma_ref):
    x = x_ref[...]
    ma_ref[...] = jnp.dot(m_ref[...], x, preferred_element_type=jnp.float32)
    res_ref[...] = x - ma_ref[...]


# --------------------------------------------------------------- tiling -----

def _round_up(a, b):
    return ((a + b - 1) // b) * b


def _pick_lane_tiling(T, n_lanes, n_dbuf_arrays, n_blk_max, budget_bytes):
    """Largest 128-aligned lane tile whose per-step VMEM footprint fits.

    n_dbuf_arrays: number of (T, n_blk) arrays double-buffered per grid step
    (inputs + outputs).  The (T, T) EMA matrix is single-buffered.
    Returns (n_blk, padded_lane_width, n_tiles); padded width is an exact
    multiple of n_blk so every grid step is a full, lane-dense tile.
    """
    blk_lanes = max(1, min(n_blk_max // 128, n_lanes))

    def footprint(bl):
        return 4 * T * T + 2 * n_dbuf_arrays * 4 * T * bl * 128

    while blk_lanes > 1 and footprint(blk_lanes) > budget_bytes:
        blk_lanes -= 1

    n_tiles = -(-n_lanes // blk_lanes)
    blk_lanes = -(-n_lanes // n_tiles)        # tighten: same tile count, less padding
    n_blk = blk_lanes * 128
    return n_blk, n_tiles * n_blk, n_tiles


# --------------------------------------------------------------- wrappers ---

def _decomp_native(x, M, n_blk_max, budget):
    """Channel-heavy path: native (B, T, C) layout, no wrapper transposes."""
    B, T, C = x.shape
    c_lanes = -(-C // 128)
    c_blk, C_pad, _ = _pick_lane_tiling(T, c_lanes, 3, n_blk_max, budget)
    if C_pad != C:
        x = jnp.pad(x, ((0, 0), (0, 0), (0, C_pad - C)))

    grid = (B, C_pad // c_blk)
    grid_spec = pltpu.PrefetchScalarGridSpec(
        num_scalar_prefetch=0,
        grid=grid,
        in_specs=[
            pl.BlockSpec((T, T), lambda b, c: (0, 0),
                         pipeline_mode=pl.Buffered(1)),        # resident EMA matrix
            pl.BlockSpec((None, T, c_blk), lambda b, c: (b, 0, c)),
        ],
        out_specs=[
            pl.BlockSpec((None, T, c_blk), lambda b, c: (b, 0, c)),
            pl.BlockSpec((None, T, c_blk), lambda b, c: (b, 0, c)),
        ],
    )
    res, ma = pl.pallas_call(
        _decomp_kernel,
        out_shape=(jax.ShapeDtypeStruct((B, T, C_pad), jnp.float32),
                   jax.ShapeDtypeStruct((B, T, C_pad), jnp.float32)),
        grid_spec=grid_spec,
        compiler_params=pltpu.CompilerParams(
            dimension_semantics=("parallel", "parallel")),
    )(M, x)
    if C_pad != C:
        res = res[:, :, :C]
        ma = ma[:, :, :C]
    return res, ma


def _decomp_fused_lanes(x, M, n_blk_max, budget):
    """Few-channel path: fuse batch*channel into a lane-dense (T, B*C) axis."""
    B, T, C = x.shape
    N = B * C
    n_lanes = -(-N // 128)
    # Keep at least two lane tiles when possible so megacore / v7x's second
    # TensorCore gets work.
    cap = ((n_lanes + 1) // 2) * 128 if n_lanes >= 2 else 128
    n_blk, N_pad, _ = _pick_lane_tiling(T, n_lanes, 2,
                                        min(n_blk_max, cap), budget)

    xt = jnp.transpose(x, (1, 0, 2)).reshape(T, N)           # (T, B*C)
    if N_pad != N:
        xt = jnp.pad(xt, ((0, 0), (0, N_pad - N)))

    grid = (N_pad // n_blk,)
    grid_spec = pltpu.PrefetchScalarGridSpec(
        num_scalar_prefetch=0,
        grid=grid,
        in_specs=[
            pl.BlockSpec((T, T), lambda n: (0, 0),
                         pipeline_mode=pl.Buffered(1)),        # resident EMA matrix
            pl.BlockSpec((T, n_blk), lambda n: (0, n)),        # x lane tile
        ],
        out_specs=pl.BlockSpec((T, n_blk), lambda n: (0, n)),  # moving average
    )
    ma_t = pl.pallas_call(
        _ema_kernel,
        out_shape=jax.ShapeDtypeStruct((T, N_pad), jnp.float32),
        grid_spec=grid_spec,
        compiler_params=pltpu.CompilerParams(
            dimension_semantics=("parallel",)),
    )(M, xt)

    ma = jnp.transpose(ma_t[:, :N].reshape(T, B, C), (1, 0, 2))
    res = x - ma                      # fused by XLA with the un-transpose
    return res, ma


def series_decomp_pallas(x, alpha, *, n_blk_max=1024,
                         vmem_budget_bytes=28 * 1024 * 1024):
    """x: (B, T, C). Returns (res, moving_average), both (B, T, C) float32."""
    B, T, C = x.shape
    x = x.astype(jnp.float32)
    M = jnp.asarray(_ema_matrix(T, alpha))
    if C >= 128:
        return _decomp_native(x, M, n_blk_max, vmem_budget_bytes)
    return _decomp_fused_lanes(x, M, n_blk_max, vmem_budget_bytes)


# --------------------------------------------------------------- reference --

def _series_decomp_ref_np(x_np, alpha):
    """NumPy float64 reference mirroring the PyTorch double-precision forward."""
    B, T, C = x_np.shape
    x64 = x_np.astype(np.float64)
    powers = np.arange(T, dtype=np.float64)[::-1]
    divisor = np.power(1.0 - alpha, powers)
    weights = divisor.copy()
    weights[1:] = weights[1:] * alpha
    ma = np.cumsum(x64 * weights.reshape(1, T, 1), axis=1) / divisor.reshape(1, T, 1)
    ma = ma.astype(np.float32)
    res = x_np.astype(np.float32) - ma
    return res, ma


if __name__ == "__main__":
    alpha = 0.3
    key = jax.random.PRNGKey(0)

    test_shapes = [
        (2, 8, 4),      # tiny smoke test            (fused-lane path, grid 1)
        (2, 336, 7),    # DLinear-like look-back     (fused-lane path, grid 1)
        (5, 24, 40),    # B*C=200 -> padded, 2 tiles (fused-lane path)
        (2, 16, 200),   # channel-heavy              (native-layout path)
        (2, 16, 1100),  # channel-heavy, multi C-tile with padding (native path)
    ]

    for (B, T, C) in test_shapes:
        key, sub = jax.random.split(key)
        x = jax.random.normal(sub, (B, T, C), dtype=jnp.float32)

        res, ma = series_decomp_pallas(x, alpha)
        res = jax.block_until_ready(res)
        ma = jax.block_until_ready(ma)

        res_ref, ma_ref = _series_decomp_ref_np(np.asarray(x), alpha)
        np.testing.assert_allclose(np.asarray(ma), ma_ref, rtol=1e-4, atol=1e-4)
        np.testing.assert_allclose(np.asarray(res), res_ref, rtol=1e-4, atol=1e-4)

    print("KERNEL_OK")
</pallas_src>

<mosaic_0001>
module attributes {stable_mosaic.version = 11 : i64} {
  func.func @_ema_kernel(%arg0: i32, %arg1: memref<8x8xf32, #tpu.memory_space<vmem>>, %arg2: memref<8x128xf32, #tpu.memory_space<vmem>>, %arg3: memref<8x128xf32, #tpu.memory_space<vmem>>) attributes {dimension_semantics = [#tpu.dimension_semantics<parallel>], iteration_bounds = array<i64: 1>, scalar_prefetch = 0 : i64, scratch_operands = 0 : i64, tpu.core_type = #tpu.core_type<tc>, window_params = [{pipeline_mode = #tpu.pipeline_mode<synchronous>, transform_indices = @transform_0, window_bounds = array<i64: 8, 8>}, {transform_indices = @transform_1, window_bounds = array<i64: 8, 128>}, {transform_indices = @transform_2, window_bounds = array<i64: 8, 128>}]} {
    %c0 = arith.constant 0 : index
    %c0_0 = arith.constant 0 : index
    %0 = vector.load %arg1[%c0, %c0_0] : memref<8x8xf32, #tpu.memory_space<vmem>>, vector<8x8xf32>
    %c0_1 = arith.constant 0 : index
    %c0_2 = arith.constant 0 : index
    %1 = vector.load %arg2[%c0_1, %c0_2] : memref<8x128xf32, #tpu.memory_space<vmem>>, vector<8x128xf32>
    %cst = arith.constant dense<0.000000e+00> : vector<8x128xf32>
    %2 = tpu.matmul %0, %1, %cst {dimension_numbers = #tpu.dot_dimension_numbers<[1], [0], [0], [1], [0, 0, 1, 1], [], []>} : vector<8x8xf32>, vector<8x128xf32>, vector<8x128xf32> -> vector<8x128xf32>
    %c0_3 = arith.constant 0 : index
    %c0_4 = arith.constant 0 : index
    %3 = vector.load %arg3[%c0_3, %c0_4] : memref<8x128xf32, #tpu.memory_space<vmem>>, vector<8x128xf32>
    tpu.vector_store %arg3[%c0_3, %c0_4], %2 {strides = array<i32>} : memref<8x128xf32, #tpu.memory_space<vmem>>, vector<8x128xf32>,
    return
  }
  func.func @transform_0(%arg0: i32) -> (i32, i32) {
    %c0_i32 = arith.constant 0 : i32
    %c0_i32_0 = arith.constant 0 : i32
    %c0_i32_1 = arith.constant 0 : i32
    return %c0_i32, %c0_i32_0 : i32, i32
  }
  func.func @transform_1(%arg0: i32) -> (i32, i32) {
    %c0_i32 = arith.constant 0 : i32
    %c0_i32_0 = arith.constant 0 : i32
    return %c0_i32, %arg0 : i32, i32
  }
  func.func @transform_2(%arg0: i32) -> (i32, i32) {
    %c0_i32 = arith.constant 0 : i32
    %c0_i32_0 = arith.constant 0 : i32
    return %c0_i32, %arg0 : i32, i32
  }
}

</mosaic_0001>

<llo_original>
// kernel: tpu_custom_call.1
$region0: #{tpu_custom_call.1}
  #allocation0 [shape = 'u32[]', space=smem, size = 0x4, offset = 0x4, fixed_abs, tag = 'smem constant byte address 0x4 - core index']
  #allocation1 [shape = 'u32[144,128]{1,0:T(1,128)}', space=vmem, size = 0x12000, scoped, tag = 'internal scratch']
  %s0 = inlined_call_operand.hbm [shape: f32[8,8], index: 0, kind: input, shape index: {}]
  %s1 = inlined_call_operand.hbm [shape: f32[8,128], index: 1, kind: input, shape index: {}]
  %s2 = inlined_call_operand.hbm [shape: f32[8,128], index: 2, kind: output, shape index: {}]
  %s3 = sld [smem:[#allocation0]]
  $region26: #{tpu_custom_call.1} parent=0
    _
  %s5 = ssub.s32 1, %s3
  %s6 = scalar_select 0, %s5, %s3
  $region1: #{tpu_custom_call.1} parent=0
    #allocation2 [shape = 'u8[4096]{0}', space=vmem, size = 0x1000, scoped, tag = 'input window, operand 0, single buffered']
    #allocation3 [shape = 's32[1]{0}', space=sflag, size = 0x4, scoped, tag = 'scoped memory for tpu_custom_call.1']
    #allocation4 [shape = 's32[1]{0}', space=sflag, size = 0x4, scoped, tag = 'scoped memory for tpu_custom_call.1']
    #allocation5 [shape = 'u8[4096]{0}', space=vmem, size = 0x1000, scoped, tag = 'input window, operand 1, single buffered']
    #allocation6 [shape = 's32[1]{0}', space=sflag, size = 0x4, scoped, tag = 'scoped memory for tpu_custom_call.1']
    #allocation7 [shape = 'u8[4096]{0}', space=vmem, size = 0x1000, scoped, tag = 'output window, operand 0, single buffered']
    %7 = vsyncpa [#allocation3], 0
    %8 = vsyncpa [#allocation6], 0
    %9 = vsyncpa [#allocation4], 0
    // Predicated region
    $region2: #{tpu_custom_call.1} parent=1 // pred_check
      _
    $region3: #{tpu_custom_call.1} parent=1 // pred_check_branch
      %11 = sbr.rel (0) target = $region5
    $region4: #{tpu_custom_call.1} parent=1 // pred_region
      %s13 = ssub.s32 128, 128
      %14 = vsyncadd [#allocation3], %s13
      %s16 = sshll.u32 [#allocation2], 4
      %s17 = int_to_ptr.vmem [resolvable:$true] %s16
      %19 = dma.hbm_to_vmem [thread:$0]  %s0, 128, %s17, [#allocation3]
    $region5: #{tpu_custom_call.1} parent=1 // pred_fallthru
      _
    // Predicated region
    $region6: #{tpu_custom_call.1} parent=1 // pred_check
      _
    $region7: #{tpu_custom_call.1} parent=1 // pred_check_branch
      %21 = sbr.rel (0) target = $region9
    $region8: #{tpu_custom_call.1} parent=1 // pred_region
      %s23 = ssub.s32 128, 128
      %24 = vsyncadd [#allocation6], %s23
      %s26 = sshll.u32 [#allocation5], 4
      %s27 = int_to_ptr.vmem [resolvable:$true] %s26
      %29 = dma.hbm_to_vmem [thread:$0]  %s1, 128, %s27, [#allocation6]
    $region9: #{tpu_custom_call.1} parent=1 // pred_fallthru
      _
    // Predicated region
    $region10: #{tpu_custom_call.1} parent=1 // pred_check
      _
    $region11: #{tpu_custom_call.1} parent=1 // pred_check_branch
      %31 = sbr.rel (0) target = $region13
    $region12: #{tpu_custom_call.1} parent=1 // pred_region
      %32 = dma.done [#allocation3], 128
    $region13: #{tpu_custom_call.1} parent=1 // pred_fallthru
      _
    // Predicated region
    $region14: #{tpu_custom_call.1} parent=1 // pred_check
      _
    $region15: #{tpu_custom_call.1} parent=1 // pred_check_branch
      %34 = sbr.rel (0) target = $region17
    $region16: #{tpu_custom_call.1} parent=1 // pred_region
      %35 = dma.done [#allocation6], 128
    $region17: #{tpu_custom_call.1} parent=1 // pred_fallthru
      _
    %v36 = vld [vmem:[#allocation2] sm:$0xff]
    %v37 = vld [vmem:[#allocation5] sm:$0xff]
    %vm38 = vcmask 64512
    %v40 = vsel %vm38, %v36, 0
    %42 = vmatprep.subr.mxu0 0.0
    %43 = vmatpush1.msra.mxu0 %v37
    %44 = vmatprep.subr.mxu0 0.0
    %45 = vmatpush1.msra.mxu0 0.0
    %46 = vmatprep.subr.mxu0 0.0
    %47 = vmatpush1.msra.mxu0 0.0
    %48 = vmatprep.subr.mxu0 0.0
    %49 = vmatpush1.msra.mxu0 0.0
    %50 = vmatprep.subr.mxu0 0.0
    %51 = vmatpush1.msra.mxu0 0.0
    %52 = vmatprep.subr.mxu0 0.0
    %53 = vmatpush1.msra.mxu0 0.0
    %54 = vmatprep.subr.mxu0 0.0
    %55 = vmatpush1.msra.mxu0 0.0
    %56 = vmatprep.subr.mxu0 0.0
    %57 = vmatpush1.msra.mxu0 0.0
    %58 = vmatprep.subr.mxu0 0.0
    %59 = vmatpush1.msra.mxu0 0.0
    %60 = vmatprep.subr.mxu0 0.0
    %61 = vmatpush1.msra.mxu0 0.0
    %62 = vmatprep.subr.mxu0 0.0
    %63 = vmatpush1.msra.mxu0 0.0
    %64 = vmatprep.subr.mxu0 0.0
    %65 = vmatpush1.msra.mxu0 0.0
    %66 = vmatprep.subr.mxu0 0.0
    %67 = vmatpush1.msra.mxu0 0.0
    %68 = vmatprep.subr.mxu0 0.0
    %69 = vmatpush1.msra.mxu0 0.0
    %70 = vmatprep.subr.mxu0 0.0
    %71 = vmatpush1.msra.mxu0 0.0
    %72 = vmatprep.subr.mxu0 0.0
    %73 = vmatpush1.msra.mxu0 0.0
    %74 = vmatprep.subr.mxu0 0.0
    %75 = vmatpush1.msra.mxu0 0.0
    %76 = vmatprep.subr.mxu0 0.0
    %77 = vmatpush1.msra.mxu0 0.0
    %78 = vmatprep.subr.mxu0 0.0
    %79 = vmatpush1.msra.mxu0 0.0
    %80 = vmatprep.subr.mxu0 0.0
    %81 = vmatpush1.msra.mxu0 0.0
    %82 = vmatprep.subr.mxu0 0.0
    %83 = vmatpush1.msra.mxu0 0.0
    %84 = vmatprep.subr.mxu0 0.0
    %85 = vmatpush1.msra.mxu0 0.0
    %86 = vmatprep.subr.mxu0 0.0
    %87 = vmatpush1.msra.mxu0 0.0
    %88 = vmatprep.subr.mxu0 0.0
    %89 = vmatpush1.msra.mxu0 0.0
    %90 = vmatprep.subr.mxu0 0.0
    %91 = vmatpush1.msra.mxu0 0.0
    %92 = vmatprep.subr.mxu0 0.0
    %93 = vmatpush1.msra.mxu0 0.0
    %94 = vmatprep.subr.mxu0 0.0
    %95 = vmatpush1.msra.mxu0 0.0
    %96 = vmatprep.subr.mxu0 0.0
    %97 = vmatpush1.msra.mxu0 0.0
    %98 = vmatprep.subr.mxu0 0.0
    %99 = vmatpush1.msra.mxu0 0.0
    %100 = vmatprep.subr.mxu0 0.0
    %101 = vmatpush1.msra.mxu0 0.0
    %102 = vmatprep.subr.mxu0 0.0
    %103 = vmatpush1.msra.mxu0 0.0
    %104 = vmatprep.subr.mxu0 0.0
    %105 = vmatpush1.msra.mxu0 0.0
    %106 = vmatprep.mubr.f32.mxu0 0.0
    %107 = vmatmul.mubr.f32.gmra.mrb[0].mxu0 %v40
    %v108 = vpop.f32.mrb[0].mxu0
    %v109 = vadd.f32 0.0, %v108
    %v110 = vpop.f32.mrb[0].mxu0
    %111 = vdwg.mxu0
    %112 = vst [vmem:[#allocation7] sm:$0xff] %v109
    // Predicated region
    $region18: #{tpu_custom_call.1} parent=1 // pred_check
      _
    $region19: #{tpu_custom_call.1} parent=1 // pred_check_branch
      %114 = sbr.rel (0) target = $region21
    $region20: #{tpu_custom_call.1} parent=1 // pred_region
      %s116 = ssub.s32 128, 128
      %117 = vsyncadd [#allocation4], %s116
      %s119 = sshll.u32 [#allocation7], 4
      %s120 = int_to_ptr.vmem [resolvable:$true] %s119
      %122 = dma.vmem_to_hbm [thread:$0]  %s120, 128, %s2, [#allocation4]
    $region21: #{tpu_custom_call.1} parent=1 // pred_fallthru
      _
    // Predicated region
    $region22: #{tpu_custom_call.1} parent=1 // pred_check
      _
    $region23: #{tpu_custom_call.1} parent=1 // pred_check_branch
      %124 = sbr.rel (0) target = $region25
    $region24: #{tpu_custom_call.1} parent=1 // pred_region
      %125 = dma.done [#allocation4], 128
    $region25: #{tpu_custom_call.1} parent=1 // pred_fallthru
      _
    %126 = vsyncpa [#allocation3], 1
    %127 = vsyncpa [#allocation6], 1
    %128 = vsyncpa [#allocation4], 1

</llo_original>
